<compile_context>
chip_gen: v7x
topology: tpu7x:2x2x1
jax: 0.10.0
libtpu: 0.0.40
codegen_flags: <defaults>
</compile_context>

<pallas_src>
import functools

import jax
import jax.numpy as jnp
from jax.experimental import pallas as pl
from jax.experimental.pallas import tpu as pltpu


def logreg_kernel(b_sref, x_ref, w_ref, o_ref, *, n_rows, tm):
    """One batch tile of sigmoid(x @ w.T + b).

    b_sref: (1,)   f32 in SMEM (scalar-prefetched bias)
    x_ref : (TM,F) native dtype in VMEM (streamed, double-buffered)
    w_ref : (1,F)  x dtype in VMEM (resident weight row)
    o_ref : (1,TM) f32 in VMEM (lane-dense output block)
    """
    # (1,F)·(TM,F) contracting the feature axis -> (1,TM): the standard q·k^T MXU
    # pattern (transposed RHS), lowers without materializing an XLU transpose of the
    # big x tile.
    z = jax.lax.dot_general(
        w_ref[...], x_ref[...],
        dimension_numbers=(((1,), (1,)), ((), ())),
        preferred_element_type=jnp.float32,
    )
    z = z + b_sref[0]

    # Last tile may cover padded/undefined rows; zero those lanes so exp() never sees
    # garbage.  Static no-op when n_rows % tm == 0.
    if n_rows % tm != 0:
        lane = jax.lax.broadcasted_iota(jnp.int32, z.shape, 1) + pl.program_id(0) * tm
        z = jnp.where(lane < n_rows, z, 0.0)

    o_ref[...] = 1.0 / (1.0 + jnp.exp(-z))


def _vmem_budgets():
    """(per-x-tile byte budget, max vmem_limit_bytes) for this TPU generation."""
    try:
        vmem_cap = int(getattr(pltpu.get_tpu_info(), "vmem_capacity_bytes", 128 << 20))
    except Exception:
        vmem_cap = 128 << 20
    if vmem_cap <= (64 << 20):
        # v7x-class: 64 MiB VMEM/TC, ~2.3x the HBM BW of v6e -> bigger steps to amortize
        # the ~0.35us per-step overhead, but keep 2*tile + out + headroom well under 48 MiB.
        return 14 << 20, 48 << 20
    # v5e/v6e: 128 MiB physical VMEM.
    return 10 << 20, 72 << 20


def _row_tile(n, f, itemsize, tile_bytes):
    """Rows per grid step (TM)."""
    if n <= 128:
        return n                      # single whole-array block (overhead-bound anyway)
    n_pad = pl.cdiv(n, 128) * 128
    row_bytes = max(1, f * itemsize)
    # Bytes-based cap: biggest 128-multiple of rows that fits the per-tile byte budget.
    tm = max(128, ((tile_bytes // row_bytes) // 128) * 128)
    # Guarantee >=4 grid steps for mid/large batches so v7x's two TCs both get work and
    # DMA/compute/writeback overlap (harmless on single-TC v5e/v6e).
    if n_pad >= 4 * 128:
        tm = min(tm, max(128, ((n_pad // 4) // 128) * 128))
    return min(tm, n_pad)


def _jnp_fast_path(x, weight, bias):
    z = jnp.dot(x.astype(jnp.float32), weight.reshape(-1, 1).astype(jnp.float32))
    z = z + bias.astype(jnp.float32).reshape(1, 1)
    return 1.0 / (1.0 + jnp.exp(-z))


def logistic_regression(x, weight, bias, *, force_pallas=False, min_pallas_rows=1024):
    """x: [N, F], weight: [1, F] (torch layout), bias: [1] -> sigmoid(x @ w.T + b) as [N, 1] f32."""
    n, f = x.shape

    if not force_pallas and n < min_pallas_rows:
        # Launch/overhead-bound regime: XLA's fused matvec is at least as fast and avoids
        # padding/reshape plumbing.
        return _jnp_fast_path(x, weight, bias)

    w = weight.reshape(1, f).astype(x.dtype)   # tiny; keep x's (possibly narrow) dtype
    b = bias.reshape(1).astype(jnp.float32)    # scalar-prefetched to SMEM
    itemsize = x.dtype.itemsize

    tile_budget, vmem_limit_cap = _vmem_budgets()
    tm = _row_tile(n, f, itemsize, tile_budget)
    num_tiles = pl.cdiv(n, tm)
    n_pad = num_tiles * tm

    # vmem_limit derived from the actual double-buffered working set (+ headroom),
    # clamped to a generation-aware ceiling.
    x_tile_bytes = tm * f * itemsize
    vmem_limit = 2 * (x_tile_bytes + tm * 4) + 2 * f * itemsize + (4 << 20)
    vmem_limit = int(min(max(vmem_limit, 16 << 20), vmem_limit_cap))

    kernel = functools.partial(logreg_kernel, n_rows=n, tm=tm)

    out = pl.pallas_call(
        kernel,
        out_shape=jax.ShapeDtypeStruct((1, n_pad), jnp.float32),
        grid_spec=pltpu.PrefetchScalarGridSpec(
            num_scalar_prefetch=1,                                  # bias -> SMEM
            grid=(num_tiles,),
            in_specs=[
                pl.BlockSpec((tm, f), lambda i, bs: (i, 0)),        # streamed x tiles
                pl.BlockSpec((1, f), lambda i, bs: (0, 0)),         # resident weight row
            ],
            out_specs=pl.BlockSpec((1, tm), lambda i, bs: (0, i)),  # lane-dense output
        ),
        compiler_params=pltpu.CompilerParams(
            dimension_semantics=("parallel",),   # v7x megacore shards the batch tiles
            vmem_limit_bytes=vmem_limit,
        ),
        cost_estimate=pl.CostEstimate(
            flops=2 * n * f,
            transcendentals=n,
            bytes_accessed=n * f * itemsize + f * itemsize + n * 4 + 4,
        ),
    )(b, x, w)

    return out[0, :n].reshape(n, 1)


def _reference(x, weight, bias):
    z = jnp.sum(x.astype(jnp.float32) * weight.astype(jnp.float32), axis=1, keepdims=True) \
        + bias.astype(jnp.float32)
    return 1.0 / (1.0 + jnp.exp(-z))


if __name__ == "__main__":
    key = jax.random.PRNGKey(0)
    kx, kw, kb, kx2, kx3 = jax.random.split(key, 5)

    # 1) Small shapes consistent with the module (batch=8, n_input_features=32),
    #    forced through the Pallas path so the kernel itself is exercised.
    N, F = 8, 32
    x = jax.random.normal(kx, (N, F), dtype=jnp.float32)
    bound = 1.0 / jnp.sqrt(jnp.float32(F))   # nn.Linear default init range
    weight = jax.random.uniform(kw, (1, F), minval=-bound, maxval=bound, dtype=jnp.float32)
    bias = jax.random.uniform(kb, (1,), minval=-bound, maxval=bound, dtype=jnp.float32)

    out = jax.block_until_ready(logistic_regression(x, weight, bias, force_pallas=True))
    ref = _reference(x, weight, bias)
    assert out.shape == (N, 1)
    assert jnp.allclose(out, ref, atol=1e-5, rtol=1e-5)

    # 2) Ragged batch (padded last tile + lane masking), forced through Pallas.
    N2, F2 = 1000, 256
    x2 = jax.random.normal(kx2, (N2, F2), dtype=jnp.float32)
    bound2 = 1.0 / jnp.sqrt(jnp.float32(F2))
    w2 = jax.random.uniform(kw, (1, F2), minval=-bound2, maxval=bound2, dtype=jnp.float32)
    b2 = jax.random.uniform(kb, (1,), minval=-bound2, maxval=bound2, dtype=jnp.float32)

    out2 = jax.block_until_ready(logistic_regression(x2, w2, b2, force_pallas=True))
    ref2 = _reference(x2, w2, b2)
    assert out2.shape == (N2, 1)
    assert jnp.allclose(out2, ref2, atol=1e-4, rtol=1e-4)

    # 3) Larger batch: default path (Pallas, multi-step grid, megacore-friendly tiling).
    N3, F3 = 4096, 256
    x3 = jax.random.normal(kx3, (N3, F3), dtype=jnp.float32)
    out3 = jax.block_until_ready(logistic_regression(x3, w2, b2))
    ref3 = _reference(x3, w2, b2)
    assert out3.shape == (N3, 1)
    assert jnp.allclose(out3, ref3, atol=1e-4, rtol=1e-4)

    print("KERNEL_OK")
</pallas_src>

<mosaic_0001>
module attributes {stable_mosaic.version = 11 : i64} {
  func.func @logreg_kernel(%arg0: i32, %arg1: memref<1xf32, #tpu.memory_space<smem>>, %arg2: memref<8x32xf32, #tpu.memory_space<vmem>>, %arg3: memref<1x32xf32, #tpu.memory_space<vmem>>, %arg4: memref<1x8xf32, #tpu.memory_space<vmem>>) attributes {dimension_semantics = [#tpu.dimension_semantics<parallel>], iteration_bounds = array<i64: 1>, scalar_prefetch = 1 : i64, scratch_operands = 0 : i64, tpu.core_type = #tpu.core_type<tc>, window_params = [{transform_indices = @transform_0, window_bounds = array<i64: 8, 32>}, {pipeline_mode = #tpu.pipeline_mode<synchronous>, transform_indices = @transform_1, window_bounds = array<i64: 1, 32>}, {transform_indices = @transform_2, window_bounds = array<i64: 1, 8>}]} {
    %c0 = arith.constant 0 : index
    %c0_0 = arith.constant 0 : index
    %0 = vector.load %arg3[%c0, %c0_0] : memref<1x32xf32, #tpu.memory_space<vmem>>, vector<1x32xf32>
    %c0_1 = arith.constant 0 : index
    %c0_2 = arith.constant 0 : index
    %1 = vector.load %arg2[%c0_1, %c0_2] : memref<8x32xf32, #tpu.memory_space<vmem>>, vector<8x32xf32>
    %cst = arith.constant dense<0.000000e+00> : vector<1x8xf32>
    %2 = tpu.matmul %0, %1, %cst {dimension_numbers = #tpu.dot_dimension_numbers<[1], [1], [0], [0], [0, 0, 1, 0], [], []>} : vector<1x32xf32>, vector<8x32xf32>, vector<1x8xf32> -> vector<1x8xf32>
    %c0_3 = arith.constant 0 : index
    %3 = memref.load %arg1[%c0_3] : memref<1xf32, #tpu.memory_space<smem>>
    %4 = vector.broadcast %3 : f32 to vector<1x8xf32>
    %5 = arith.addf %2, %4 : vector<1x8xf32>
    %cst_4 = arith.constant 0.000000e+00 : f32
    %6 = vector.broadcast %cst_4 : f32 to vector<1x8xf32>
    %7 = arith.subf %6, %5 : vector<1x8xf32>
    %8 = math.exp %7 : vector<1x8xf32>
    %cst_5 = arith.constant 1.000000e+00 : f32
    %9 = vector.broadcast %cst_5 : f32 to vector<1x8xf32>
    %10 = arith.addf %9, %8 : vector<1x8xf32>
    %cst_6 = arith.constant 1.000000e+00 : f32
    %11 = vector.broadcast %cst_6 : f32 to vector<1x8xf32>
    %12 = arith.divf %11, %10 : vector<1x8xf32>
    %c0_7 = arith.constant 0 : index
    %c0_8 = arith.constant 0 : index
    %13 = vector.load %arg4[%c0_7, %c0_8] : memref<1x8xf32, #tpu.memory_space<vmem>>, vector<1x8xf32>
    tpu.vector_store %arg4[%c0_7, %c0_8], %12 {strides = array<i32>} : memref<1x8xf32, #tpu.memory_space<vmem>>, vector<1x8xf32>,
    return
  }
  func.func @transform_0(%arg0: i32, %arg1: memref<1xf32, #tpu.memory_space<smem>>) -> (i32, i32) {
    %c0_i32 = arith.constant 0 : i32
    %c0_i32_0 = arith.constant 0 : i32
    return %arg0, %c0_i32 : i32, i32
  }
  func.func @transform_1(%arg0: i32, %arg1: memref<1xf32, #tpu.memory_space<smem>>) -> (i32, i32) {
    %c0_i32 = arith.constant 0 : i32
    %c0_i32_0 = arith.constant 0 : i32
    %c0_i32_1 = arith.constant 0 : i32
    return %c0_i32, %c0_i32_0 : i32, i32
  }
  func.func @transform_2(%arg0: i32, %arg1: memref<1xf32, #tpu.memory_space<smem>>) -> (i32, i32) {
    %c0_i32 = arith.constant 0 : i32
    %c0_i32_0 = arith.constant 0 : i32
    return %c0_i32, %arg0 : i32, i32
  }
}

</mosaic_0001>

<llo_original>
// kernel: tpu_custom_call.1
$region0: #{tpu_custom_call.1}
  #allocation0 [shape = 'u32[]', space=smem, size = 0x4, offset = 0x4, fixed_abs, tag = 'smem constant byte address 0x4 - core index']
  #allocation1 [shape = 'u32[144,128]{1,0:T(1,128)}', space=vmem, size = 0x12000, scoped, tag = 'internal scratch']
  #allocation2 [shape = 's32[1]{0}', space=sflag, size = 0x4, scoped, tag = 'scoped memory for tpu_custom_call.1']
  #allocation3 [shape = 'f32[1]{0:T(128)S(6)}', space=smem, size = 0x200, scoped, tag = 'prefetched SMEM operand 0']
  %s0 = inlined_call_operand.<no memory space> [shape: f32[1], index: 0, kind: input, shape index: {}]
  %s1 = inlined_call_operand.hbm [shape: f32[8,32], index: 1, kind: input, shape index: {}]
  %s2 = inlined_call_operand.vmem [shape: f32[1,32], index: 2, kind: input, shape index: {}]
  %s3 = inlined_call_operand.hbm [shape: f32[1,8], index: 3, kind: output, shape index: {}]
  %s4 = sld [smem:[#allocation0]]
  $region22: #{tpu_custom_call.1} parent=0
    _
  %s6 = ssub.s32 1, %s4
  %s7 = scalar_select 0, %s6, %s4
  %8 = sst [smem:[#allocation3]] %s0
  $region1: #{tpu_custom_call.1} parent=0
    #allocation4 [shape = 'u8[4096]{0}', space=vmem, size = 0x1000, scoped, tag = 'input window, operand 1, single buffered']
    #allocation5 [shape = 's32[1]{0}', space=sflag, size = 0x4, scoped, tag = 'scoped memory for tpu_custom_call.1']
    #allocation6 [shape = 's32[1]{0}', space=sflag, size = 0x4, scoped, tag = 'scoped memory for tpu_custom_call.1']
    #allocation7 [shape = 'u8[512]{0}', space=vmem, size = 0x400, scoped, tag = 'output window, operand 0, single buffered']
    %9 = vsyncpa [#allocation5], 0
    %10 = vsyncpa [#allocation6], 0
    // Predicated region
    $region2: #{tpu_custom_call.1} parent=1 // pred_check
      _
    $region3: #{tpu_custom_call.1} parent=1 // pred_check_branch
      %12 = sbr.rel (0) target = $region5
    $region4: #{tpu_custom_call.1} parent=1 // pred_region
      %s14 = ssub.s32 128, 128
      %15 = vsyncadd [#allocation5], %s14
      %s17 = sshll.u32 [#allocation4], 4
      %s18 = int_to_ptr.vmem [resolvable:$true] %s17
      %20 = dma.hbm_to_vmem [thread:$0]  %s1, 128, %s18, [#allocation5]
    $region5: #{tpu_custom_call.1} parent=1 // pred_fallthru
      _
    // Predicated region
    $region6: #{tpu_custom_call.1} parent=1 // pred_check
      _
    $region7: #{tpu_custom_call.1} parent=1 // pred_check_branch
      %22 = sbr.rel (0) target = $region9
    $region8: #{tpu_custom_call.1} parent=1 // pred_region
      _
    $region9: #{tpu_custom_call.1} parent=1 // pred_fallthru
      _
    // Predicated region
    $region10: #{tpu_custom_call.1} parent=1 // pred_check
      _
    $region11: #{tpu_custom_call.1} parent=1 // pred_check_branch
      %24 = sbr.rel (0) target = $region13
    $region12: #{tpu_custom_call.1} parent=1 // pred_region
      %25 = dma.done [#allocation5], 128
    $region13: #{tpu_custom_call.1} parent=1 // pred_fallthru
      _
    %v26 = vld [vmem:[%s2] sm:$0x1]
    %v27 = vld [vmem:[#allocation4] sm:$0xff]
    %s28 = sld [smem:[#allocation3]]
    %v29 = vstv %s28
    %vm30 = vcmask 261120
    %v32 = vsel %vm30, %v26, 0
    %v35 = vsel %vm30, %v27, 0
    %37 = vmatprep.subr.mxu0 0.0
    %38 = vmatpush1.xpose.msra.mxu0 %v35
    %39 = vmatprep.subr.mxu0 0.0
    %40 = vmatpush1.xpose.msra.mxu0 0.0
    %41 = vmatprep.subr.mxu0 0.0
    %42 = vmatpush1.xpose.msra.mxu0 0.0
    %43 = vmatprep.subr.mxu0 0.0
    %44 = vmatpush1.xpose.msra.mxu0 0.0
    %45 = vmatprep.subr.mxu0 0.0
    %46 = vmatpush1.xpose.msra.mxu0 0.0
    %47 = vmatprep.subr.mxu0 0.0
    %48 = vmatpush1.xpose.msra.mxu0 0.0
    %49 = vmatprep.subr.mxu0 0.0
    %50 = vmatpush1.xpose.msra.mxu0 0.0
    %51 = vmatprep.subr.mxu0 0.0
    %52 = vmatpush1.xpose.msra.mxu0 0.0
    %53 = vmatprep.subr.mxu0 0.0
    %54 = vmatpush1.xpose.msra.mxu0 0.0
    %55 = vmatprep.subr.mxu0 0.0
    %56 = vmatpush1.xpose.msra.mxu0 0.0
    %57 = vmatprep.subr.mxu0 0.0
    %58 = vmatpush1.xpose.msra.mxu0 0.0
    %59 = vmatprep.subr.mxu0 0.0
    %60 = vmatpush1.xpose.msra.mxu0 0.0
    %61 = vmatprep.subr.mxu0 0.0
    %62 = vmatpush1.xpose.msra.mxu0 0.0
    %63 = vmatprep.subr.mxu0 0.0
    %64 = vmatpush1.xpose.msra.mxu0 0.0
    %65 = vmatprep.subr.mxu0 0.0
    %66 = vmatpush1.xpose.msra.mxu0 0.0
    %67 = vmatprep.subr.mxu0 0.0
    %68 = vmatpush1.xpose.msra.mxu0 0.0
    %69 = vmatprep.subr.mxu0 0.0
    %70 = vmatpush1.xpose.msra.mxu0 0.0
    %71 = vmatprep.subr.mxu0 0.0
    %72 = vmatpush1.xpose.msra.mxu0 0.0
    %73 = vmatprep.subr.mxu0 0.0
    %74 = vmatpush1.xpose.msra.mxu0 0.0
    %75 = vmatprep.subr.mxu0 0.0
    %76 = vmatpush1.xpose.msra.mxu0 0.0
    %77 = vmatprep.subr.mxu0 0.0
    %78 = vmatpush1.xpose.msra.mxu0 0.0
    %79 = vmatprep.subr.mxu0 0.0
    %80 = vmatpush1.xpose.msra.mxu0 0.0
    %81 = vmatprep.subr.mxu0 0.0
    %82 = vmatpush1.xpose.msra.mxu0 0.0
    %83 = vmatprep.subr.mxu0 0.0
    %84 = vmatpush1.xpose.msra.mxu0 0.0
    %85 = vmatprep.subr.mxu0 0.0
    %86 = vmatpush1.xpose.msra.mxu0 0.0
    %87 = vmatprep.subr.mxu0 0.0
    %88 = vmatpush1.xpose.msra.mxu0 0.0
    %89 = vmatprep.subr.mxu0 0.0
    %90 = vmatpush1.xpose.msra.mxu0 0.0
    %91 = vmatprep.subr.mxu0 0.0
    %92 = vmatpush1.xpose.msra.mxu0 0.0
    %93 = vmatprep.subr.mxu0 0.0
    %94 = vmatpush1.xpose.msra.mxu0 0.0
    %95 = vmatprep.subr.mxu0 0.0
    %96 = vmatpush1.xpose.msra.mxu0 0.0
    %97 = vmatprep.subr.mxu0 0.0
    %98 = vmatpush1.xpose.msra.mxu0 0.0
    %99 = vmatprep.subr.mxu0 0.0
    %100 = vmatpush1.xpose.msra.mxu0 0.0
    %101 = vmatprep.mubr.f32.mxu0 0.0
    %102 = vmatmul.mubr.f32.gmra.mrb[0].mxu0 %v32
    %v103 = vpop.f32.mrb[0].mxu0
    %v104 = vadd.f32 %v29, %v103
    %v105 = vpop.f32.mrb[0].mxu0
    %106 = vdwg.mxu0
    %v107 = vsub.f32 0.0, %v104
    %v108 = vmul.f32 %v107, 1.442695
    %v109 = vpow.pop %v108
    %v110 = vadd.f32 %v109, 1.0
    %v111 = vrcp.pop %v110
    %v112 = vmul.f32 1.0, %v111
    %vm113 = vcmask 57344
    %114 = vst.msk [vmem:[#allocation7] sm:$0x1] %vm113, %v112
    // Predicated region
    $region14: #{tpu_custom_call.1} parent=1 // pred_check
      _
    $region15: #{tpu_custom_call.1} parent=1 // pred_check_branch
      %116 = sbr.rel (0) target = $region17
    $region16: #{tpu_custom_call.1} parent=1 // pred_region
      %s118 = ssub.s32 16, 16
      %119 = vsyncadd [#allocation6], %s118
      %s121 = sshll.u32 [#allocation7], 4
      %s122 = int_to_ptr.vmem [resolvable:$true] %s121
      %124 = dma.vmem_to_hbm [thread:$0]  %s122, 16, %s3, [#allocation6]
    $region17: #{tpu_custom_call.1} parent=1 // pred_fallthru
      _
    // Predicated region
    $region18: #{tpu_custom_call.1} parent=1 // pred_check
      _
    $region19: #{tpu_custom_call.1} parent=1 // pred_check_branch
      %126 = sbr.rel (0) target = $region21
    $region20: #{tpu_custom_call.1} parent=1 // pred_region
      %127 = dma.done [#allocation6], 16
    $region21: #{tpu_custom_call.1} parent=1 // pred_fallthru
      _
    %128 = vsyncpa [#allocation5], 1
    %129 = vsyncpa [#allocation6], 1

</llo_original>
